<compile_context>
chip_gen: v5e
topology: v5e:2x2
jax: 0.10.0
libtpu: 0.0.40
codegen_flags: <defaults>
</compile_context>

<pallas_src>
import jax
import jax.numpy as jnp
from jax import lax
from jax.experimental import pallas as pl
from jax.experimental.pallas import tpu as pltpu


def _round_up(x, m):
    return ((x + m - 1) // m) * m


def _triplet_loss_kernel(margin_ref, lrow_ref, lcol_ref, sqrow_ref, sqcol_ref,
                         erow_ref, ecol_ref, out_ref, acc_pos_ref, acc_neg_ref):
    i = pl.program_id(0)
    j = pl.program_id(1)

    @pl.when(j == 0)
    def _init():
        acc_pos_ref[...] = jnp.full(acc_pos_ref.shape, -1.0, jnp.float32)
        acc_neg_ref[...] = jnp.full(acc_neg_ref.shape, jnp.inf, jnp.float32)

    # Gram tile on the MXU (contract over D; rhs stays (t, D) -> no transpose).
    gram = lax.dot_general(
        erow_ref[...], ecol_ref[...],
        dimension_numbers=(((1,), (1,)), ((), ())),
        preferred_element_type=jnp.float32)                         # (t, t) f32

    # Squared pairwise distances: ||a||^2 + ||b||^2 - 2 <a, b>.
    d2 = sqrow_ref[...] + sqcol_ref[...] - 2.0 * gram
    d2 = jnp.maximum(d2, 0.0)              # guard fp cancellation (keeps d2 >= 0)

    same = lrow_ref[...] == lcol_ref[...]                           # (t, t) bool

    # Exclude the self-pair; only the diagonal tile (i == j) can contain it.
    t_m, t_n = d2.shape
    local_eye = (lax.broadcasted_iota(jnp.int32, (t_m, t_n), 0)
                 == lax.broadcasted_iota(jnp.int32, (t_m, t_n), 1))
    self_pair = jnp.logical_and(local_eye, i == j)
    pos = jnp.logical_and(same, jnp.logical_not(self_pair))

    # Elementwise running accumulators (pure VPU).  Fill -1 marks "no positive
    # seen" (any real positive has d2 >= 0), so the finalize guard is exact.
    acc_pos_ref[...] = jnp.maximum(acc_pos_ref[...], jnp.where(pos, d2, -1.0))
    acc_neg_ref[...] = jnp.minimum(acc_neg_ref[...], jnp.where(same, jnp.inf, d2))

    @pl.when(j == pl.num_programs(1) - 1)
    def _finalize():
        max_pos_d2 = jnp.max(acc_pos_ref[...], axis=1, keepdims=True)   # (t, 1)
        min_neg_d2 = jnp.min(acc_neg_ref[...], axis=1, keepdims=True)   # (t, 1)
        furthest_pos = jnp.where(
            max_pos_d2 >= 0.0,
            jnp.sqrt(jnp.maximum(max_pos_d2, 0.0) + 1e-12),
            0.0)                                    # exact 0 when no positive
        closest_neg = jnp.sqrt(min_neg_d2 + 1e-12)  # +inf if row has no negative
        margin = margin_ref[0]
        out_ref[...] = jnp.maximum(furthest_pos - closest_neg + margin, 0.0)


def triplet_loss(embeddings, labels, margin=0.2, *, tile=256):
    """embeddings: (B, D) float (f32 or bf16), labels: (B,) int. Scalar f32 loss.

    tile: square batch tile size.  Use 256 on v6e/v7x, 128 on v5e.
    """
    B, D = embeddings.shape
    t = min(int(tile), _round_up(B, 8))          # square tiles, 8-aligned
    B_pad = _round_up(B, t)
    D_pad = _round_up(D, 128)                    # lane-dense feature dim (zeros
                                                 # don't change distances/norms)

    emb = embeddings                             # keep native dtype for the MXU
    if D_pad != D:
        emb = jnp.pad(emb, ((0, 0), (0, D_pad - D)))
    labels = labels.reshape(-1).astype(jnp.int32)
    if B_pad != B:
        # Pad rows: far-away embeddings + a label no real row carries, so they
        # are never the hardest positive / closest negative of a real row.
        pad_label = jnp.max(labels) + 1
        emb = jnp.concatenate(
            [emb, jnp.full((B_pad - B, D_pad), 1e4, emb.dtype)], axis=0)
        labels = jnp.concatenate(
            [labels, jnp.full((B_pad - B,), pad_label, jnp.int32)])

    # Squared norms computed/accumulated in f32 outside the kernel, staged in
    # both orientations (no in-kernel transposes).
    emb_f32 = emb.astype(jnp.float32)
    sq = jnp.sum(emb_f32 * emb_f32, axis=1)
    sq_row = sq.reshape(B_pad, 1)
    sq_col = sq.reshape(1, B_pad)
    labels_row = labels.reshape(B_pad, 1)
    labels_col = labels.reshape(1, B_pad)
    margin_arr = jnp.asarray([margin], dtype=jnp.float32)

    grid = (B_pad // t, B_pad // t)
    per_row_loss = pl.pallas_call(
        _triplet_loss_kernel,
        out_shape=jax.ShapeDtypeStruct((B_pad, 1), jnp.float32),
        grid=grid,
        in_specs=[
            pl.BlockSpec(memory_space=pltpu.MemorySpace.SMEM),      # margin (1,)
            pl.BlockSpec((t, 1), lambda i, j: (i, 0)),              # labels row
            pl.BlockSpec((1, t), lambda i, j: (0, j)),              # labels col
            pl.BlockSpec((t, 1), lambda i, j: (i, 0)),              # ||e||^2 row
            pl.BlockSpec((1, t), lambda i, j: (0, j)),              # ||e||^2 col
            pl.BlockSpec((t, D_pad), lambda i, j: (i, 0)),          # emb row tile
            pl.BlockSpec((t, D_pad), lambda i, j: (j, 0)),          # emb col tile
        ],
        out_specs=pl.BlockSpec((t, 1), lambda i, j: (i, 0)),
        scratch_shapes=[pltpu.VMEM((t, t), jnp.float32),            # max pos d2
                        pltpu.VMEM((t, t), jnp.float32)],           # min neg d2
        compiler_params=pltpu.CompilerParams(
            dimension_semantics=("parallel", "arbitrary"),
            vmem_limit_bytes=32 * 1024 * 1024),
    )(margin_arr, labels_row, labels_col, sq_row, sq_col, emb, emb)

    # Mean over the real (unpadded) rows, done in XLA.
    return jnp.mean(per_row_loss[:B, 0])


def _triplet_loss_ref(embeddings, labels, margin=0.2):
    # Pure-JAX reference mirroring the PyTorch module exactly.
    diffs = embeddings[:, None, :] - embeddings[None, :, :]
    dists = jnp.sqrt(jnp.sum(jnp.square(diffs), axis=-1) + 1e-12)
    same = labels[:, None] == labels[None, :]
    neg = jnp.logical_not(same)
    pos = jnp.logical_and(same,
                          jnp.logical_not(jnp.eye(labels.shape[0], dtype=bool)))
    furthest_pos = jnp.max(dists * pos.astype(dists.dtype), axis=1)
    closest_neg = jnp.min(jnp.where(neg, dists, jnp.inf), axis=1)
    return jnp.mean(jnp.maximum(furthest_pos - closest_neg + margin, 0.0))


if __name__ == "__main__":
    key = jax.random.PRNGKey(0)
    B, D = 8, 32
    embeddings = jax.random.normal(key, (B, D), dtype=jnp.float32)
    # Two samples per identity -> every row has >=1 positive and >=1 negative
    # (the same assumption the PyTorch code makes).
    labels = jnp.array([0, 0, 1, 1, 2, 2, 3, 3], dtype=jnp.int32)

    loss = triplet_loss(embeddings, labels, margin=0.2)
    loss = jax.block_until_ready(loss)
    ref = _triplet_loss_ref(embeddings, labels, margin=0.2)
    assert jnp.allclose(loss, ref, atol=1e-5, rtol=1e-5), (loss, ref)

    # Exercise the batch-padding path (B not a multiple of the tile size).
    B2 = 6
    emb2 = jax.random.normal(jax.random.PRNGKey(1), (B2, D), dtype=jnp.float32)
    labels2 = jnp.array([0, 0, 1, 1, 2, 2], dtype=jnp.int32)
    loss2 = jax.block_until_ready(triplet_loss(emb2, labels2, margin=0.2))
    ref2 = _triplet_loss_ref(emb2, labels2, margin=0.2)
    assert jnp.allclose(loss2, ref2, atol=1e-5, rtol=1e-5), (loss2, ref2)

    print("KERNEL_OK")
</pallas_src>

<mosaic_0001>
module attributes {stable_mosaic.version = 11 : i64} {
  func.func @_triplet_loss_kernel(%arg0: i32, %arg1: i32, %arg2: memref<1xf32, #tpu.memory_space<smem>>, %arg3: memref<8x1xi32, #tpu.memory_space<vmem>>, %arg4: memref<1x8xi32, #tpu.memory_space<vmem>>, %arg5: memref<8x1xf32, #tpu.memory_space<vmem>>, %arg6: memref<1x8xf32, #tpu.memory_space<vmem>>, %arg7: memref<8x128xf32, #tpu.memory_space<vmem>>, %arg8: memref<8x128xf32, #tpu.memory_space<vmem>>, %arg9: memref<8x1xf32, #tpu.memory_space<vmem>>, %arg10: memref<8x8xf32, #tpu.memory_space<vmem>>, %arg11: memref<8x8xf32, #tpu.memory_space<vmem>>) attributes {dimension_semantics = [#tpu.dimension_semantics<parallel>, #tpu.dimension_semantics<arbitrary>], iteration_bounds = array<i64: 1, 1>, scalar_prefetch = 0 : i64, scratch_operands = 2 : i64, tpu.core_type = #tpu.core_type<tc>, window_params = [{transform_indices = @transform_0, window_bounds = array<i64: 1>}, {transform_indices = @transform_1, window_bounds = array<i64: 8, 1>}, {transform_indices = @transform_2, window_bounds = array<i64: 1, 8>}, {transform_indices = @transform_3, window_bounds = array<i64: 8, 1>}, {transform_indices = @transform_4, window_bounds = array<i64: 1, 8>}, {transform_indices = @transform_5, window_bounds = array<i64: 8, 128>}, {transform_indices = @transform_6, window_bounds = array<i64: 8, 128>}, {transform_indices = @transform_7, window_bounds = array<i64: 8, 1>}]} {
    %c0_i32 = arith.constant 0 : i32
    %0 = arith.cmpi eq, %arg1, %c0_i32 : i32
    %1 = arith.extui %0 : i1 to i32
    %c0_i32_0 = arith.constant 0 : i32
    %2 = arith.cmpi ne, %1, %c0_i32_0 : i32
    scf.if %2 {
      %cst_27 = arith.constant -1.000000e+00 : f32
      %42 = vector.broadcast %cst_27 : f32 to vector<8x8xf32>
      %c0_28 = arith.constant 0 : index
      %c0_29 = arith.constant 0 : index
      %43 = vector.load %arg10[%c0_28, %c0_29] : memref<8x8xf32, #tpu.memory_space<vmem>>, vector<8x8xf32>
      tpu.vector_store %arg10[%c0_28, %c0_29], %42 {strides = array<i32>} : memref<8x8xf32, #tpu.memory_space<vmem>>, vector<8x8xf32>,
      %cst_30 = arith.constant 0x7F800000 : f32
      %44 = vector.broadcast %cst_30 : f32 to vector<8x8xf32>
      %c0_31 = arith.constant 0 : index
      %c0_32 = arith.constant 0 : index
      %45 = vector.load %arg11[%c0_31, %c0_32] : memref<8x8xf32, #tpu.memory_space<vmem>>, vector<8x8xf32>
      tpu.vector_store %arg11[%c0_31, %c0_32], %44 {strides = array<i32>} : memref<8x8xf32, #tpu.memory_space<vmem>>, vector<8x8xf32>,
    } else {
    }
    %c0 = arith.constant 0 : index
    %c0_1 = arith.constant 0 : index
    %3 = vector.load %arg7[%c0, %c0_1] : memref<8x128xf32, #tpu.memory_space<vmem>>, vector<8x128xf32>
    %c0_2 = arith.constant 0 : index
    %c0_3 = arith.constant 0 : index
    %4 = vector.load %arg8[%c0_2, %c0_3] : memref<8x128xf32, #tpu.memory_space<vmem>>, vector<8x128xf32>
    %cst = arith.constant dense<0.000000e+00> : vector<8x8xf32>
    %5 = tpu.matmul %3, %4, %cst {dimension_numbers = #tpu.dot_dimension_numbers<[1], [1], [0], [0], [0, 0, 1, 0], [], []>} : vector<8x128xf32>, vector<8x128xf32>, vector<8x8xf32> -> vector<8x8xf32>
    %c0_4 = arith.constant 0 : index
    %c0_5 = arith.constant 0 : index
    %6 = vector.load %arg5[%c0_4, %c0_5] : memref<8x1xf32, #tpu.memory_space<vmem>>, vector<8x1xf32>
    %c0_6 = arith.constant 0 : index
    %c0_7 = arith.constant 0 : index
    %7 = vector.load %arg6[%c0_6, %c0_7] : memref<1x8xf32, #tpu.memory_space<vmem>>, vector<1x8xf32>
    %8 = vector.broadcast %6 : vector<8x1xf32> to vector<8x8xf32>
    %9 = vector.broadcast %7 : vector<1x8xf32> to vector<8x8xf32>
    %10 = arith.addf %8, %9 : vector<8x8xf32>
    %cst_8 = arith.constant 2.000000e+00 : f32
    %11 = vector.broadcast %cst_8 : f32 to vector<8x8xf32>
    %12 = arith.mulf %11, %5 : vector<8x8xf32>
    %13 = arith.subf %10, %12 : vector<8x8xf32>
    %cst_9 = arith.constant 0.000000e+00 : f32
    %14 = vector.broadcast %cst_9 : f32 to vector<8x8xf32>
    %15 = arith.maximumf %13, %14 : vector<8x8xf32>
    %c0_10 = arith.constant 0 : index
    %c0_11 = arith.constant 0 : index
    %16 = vector.load %arg3[%c0_10, %c0_11] : memref<8x1xi32, #tpu.memory_space<vmem>>, vector<8x1xi32>
    %c0_12 = arith.constant 0 : index
    %c0_13 = arith.constant 0 : index
    %17 = vector.load %arg4[%c0_12, %c0_13] : memref<1x8xi32, #tpu.memory_space<vmem>>, vector<1x8xi32>
    %18 = vector.broadcast %16 : vector<8x1xi32> to vector<8x8xi32>
    %19 = vector.broadcast %17 : vector<1x8xi32> to vector<8x8xi32>
    %20 = arith.cmpi eq, %18, %19 : vector<8x8xi32>
    %21 = tpu.iota {dimensions = array<i32: 0>} : vector<8x8xi32>
    %22 = tpu.iota {dimensions = array<i32: 1>} : vector<8x8xi32>
    %23 = arith.cmpi eq, %21, %22 : vector<8x8xi32>
    %24 = arith.cmpi eq, %arg0, %arg1 : i32
    %25 = vector.broadcast %24 : i1 to vector<8x8xi1>
    %26 = arith.andi %23, %25 : vector<8x8xi1>
    %cst_14 = arith.constant dense<true> : vector<8x8xi1>
    %27 = arith.xori %26, %cst_14 : vector<8x8xi1>
    %28 = arith.andi %20, %27 : vector<8x8xi1>
    %c0_15 = arith.constant 0 : index
    %c0_16 = arith.constant 0 : index
    %29 = vector.load %arg10[%c0_15, %c0_16] : memref<8x8xf32, #tpu.memory_space<vmem>>, vector<8x8xf32>
    %cst_17 = arith.constant -1.000000e+00 : f32
    %30 = vector.broadcast %cst_17 : f32 to vector<8x8xf32>
    %31 = arith.select %28, %15, %30 : vector<8x8xi1>, vector<8x8xf32>
    %32 = arith.maximumf %29, %31 : vector<8x8xf32>
    %c0_18 = arith.constant 0 : index
    %c0_19 = arith.constant 0 : index
    %33 = vector.load %arg10[%c0_18, %c0_19] : memref<8x8xf32, #tpu.memory_space<vmem>>, vector<8x8xf32>
    tpu.vector_store %arg10[%c0_18, %c0_19], %32 {strides = array<i32>} : memref<8x8xf32, #tpu.memory_space<vmem>>, vector<8x8xf32>,
    %c0_20 = arith.constant 0 : index
    %c0_21 = arith.constant 0 : index
    %34 = vector.load %arg11[%c0_20, %c0_21] : memref<8x8xf32, #tpu.memory_space<vmem>>, vector<8x8xf32>
    %cst_22 = arith.constant 0x7F800000 : f32
    %35 = vector.broadcast %cst_22 : f32 to vector<8x8xf32>
    %36 = arith.select %20, %35, %15 : vector<8x8xi1>, vector<8x8xf32>
    %37 = arith.minimumf %34, %36 : vector<8x8xf32>
    %c0_23 = arith.constant 0 : index
    %c0_24 = arith.constant 0 : index
    %38 = vector.load %arg11[%c0_23, %c0_24] : memref<8x8xf32, #tpu.memory_space<vmem>>, vector<8x8xf32>
    tpu.vector_store %arg11[%c0_23, %c0_24], %37 {strides = array<i32>} : memref<8x8xf32, #tpu.memory_space<vmem>>, vector<8x8xf32>,
    %c0_i32_25 = arith.constant 0 : i32
    %39 = arith.cmpi eq, %arg1, %c0_i32_25 : i32
    %40 = arith.extui %39 : i1 to i32
    %c0_i32_26 = arith.constant 0 : i32
    %41 = arith.cmpi ne, %40, %c0_i32_26 : i32
    scf.if %41 {
      %c0_27 = arith.constant 0 : index
      %c0_28 = arith.constant 0 : index
      %42 = vector.load %arg10[%c0_27, %c0_28] : memref<8x8xf32, #tpu.memory_space<vmem>>, vector<8x8xf32>
      %cst_29 = arith.constant dense<0xFF800000> : vector<8xf32>
      %43 = vector.multi_reduction <maximumf>, %42, %cst_29 [1] : vector<8x8xf32> to vector<8xf32>
      %44 = vector.shape_cast %43 : vector<8xf32> to vector<8x1xf32>
      %c0_30 = arith.constant 0 : index
      %c0_31 = arith.constant 0 : index
      %45 = vector.load %arg11[%c0_30, %c0_31] : memref<8x8xf32, #tpu.memory_space<vmem>>, vector<8x8xf32>
      %cst_32 = arith.constant dense<0x7F800000> : vector<8xf32>
      %46 = vector.multi_reduction <minimumf>, %45, %cst_32 [1] : vector<8x8xf32> to vector<8xf32>
      %47 = vector.shape_cast %46 : vector<8xf32> to vector<8x1xf32>
      %cst_33 = arith.constant 0.000000e+00 : f32
      %48 = vector.broadcast %cst_33 : f32 to vector<8x1xf32>
      %49 = arith.cmpf oge, %44, %48 : vector<8x1xf32>
      %cst_34 = arith.constant 0.000000e+00 : f32
      %50 = vector.broadcast %cst_34 : f32 to vector<8x1xf32>
      %51 = arith.maximumf %44, %50 : vector<8x1xf32>
      %cst_35 = arith.constant 9.99999996E-13 : f32
      %52 = vector.broadcast %cst_35 : f32 to vector<8x1xf32>
      %53 = arith.addf %51, %52 : vector<8x1xf32>
      %54 = math.sqrt %53 : vector<8x1xf32>
      %cst_36 = arith.constant 0.000000e+00 : f32
      %55 = vector.broadcast %cst_36 : f32 to vector<8x1xf32>
      %56 = arith.select %49, %54, %55 : vector<8x1xi1>, vector<8x1xf32>
      %cst_37 = arith.constant 9.99999996E-13 : f32
      %57 = vector.broadcast %cst_37 : f32 to vector<8x1xf32>
      %58 = arith.addf %47, %57 : vector<8x1xf32>
      %59 = math.sqrt %58 : vector<8x1xf32>
      %c0_38 = arith.constant 0 : index
      %60 = memref.load %arg2[%c0_38] : memref<1xf32, #tpu.memory_space<smem>>
      %61 = arith.subf %56, %59 : vector<8x1xf32>
      %62 = vector.broadcast %60 : f32 to vector<8x1xf32>
      %63 = arith.addf %61, %62 : vector<8x1xf32>
      %cst_39 = arith.constant 0.000000e+00 : f32
      %64 = vector.broadcast %cst_39 : f32 to vector<8x1xf32>
      %65 = arith.maximumf %63, %64 : vector<8x1xf32>
      %c0_40 = arith.constant 0 : index
      %c0_41 = arith.constant 0 : index
      %66 = vector.load %arg9[%c0_40, %c0_41] : memref<8x1xf32, #tpu.memory_space<vmem>>, vector<8x1xf32>
      tpu.vector_store %arg9[%c0_40, %c0_41], %65 {strides = array<i32>} : memref<8x1xf32, #tpu.memory_space<vmem>>, vector<8x1xf32>,
    } else {
    }
    return
  }
  func.func @transform_0(%arg0: i32, %arg1: i32) -> i32 {
    %c0_i32 = arith.constant 0 : i32
    %c0_i32_0 = arith.constant 0 : i32
    return %c0_i32 : i32
  }
  func.func @transform_1(%arg0: i32, %arg1: i32) -> (i32, i32) {
    %c0_i32 = arith.constant 0 : i32
    %c0_i32_0 = arith.constant 0 : i32
    return %arg0, %c0_i32 : i32, i32
  }
  func.func @transform_2(%arg0: i32, %arg1: i32) -> (i32, i32) {
    %c0_i32 = arith.constant 0 : i32
    %c0_i32_0 = arith.constant 0 : i32
    return %c0_i32, %arg1 : i32, i32
  }
  func.func @transform_3(%arg0: i32, %arg1: i32) -> (i32, i32) {
    %c0_i32 = arith.constant 0 : i32
    %c0_i32_0 = arith.constant 0 : i32
    return %arg0, %c0_i32 : i32, i32
  }
  func.func @transform_4(%arg0: i32, %arg1: i32) -> (i32, i32) {
    %c0_i32 = arith.constant 0 : i32
    %c0_i32_0 = arith.constant 0 : i32
    return %c0_i32, %arg1 : i32, i32
  }
  func.func @transform_5(%arg0: i32, %arg1: i32) -> (i32, i32) {
    %c0_i32 = arith.constant 0 : i32
    %c0_i32_0 = arith.constant 0 : i32
    return %arg0, %c0_i32 : i32, i32
  }
  func.func @transform_6(%arg0: i32, %arg1: i32) -> (i32, i32) {
    %c0_i32 = arith.constant 0 : i32
    %c0_i32_0 = arith.constant 0 : i32
    return %arg1, %c0_i32 : i32, i32
  }
  func.func @transform_7(%arg0: i32, %arg1: i32) -> (i32, i32) {
    %c0_i32 = arith.constant 0 : i32
    %c0_i32_0 = arith.constant 0 : i32
    return %arg0, %c0_i32 : i32, i32
  }
}

</mosaic_0001>

<llo_original>
// kernel: tpu_custom_call.1
$region0: #{tpu_custom_call.1}
  #allocation0 [shape = 'u32[]', space=smem, size = 0x4, offset = 0x4, fixed_abs, tag = 'smem constant byte address 0x4 - core index']
  #allocation1 [shape = 'u32[72,128]{1,0:T(1,128)}', space=vmem, size = 0x9000, scoped, tag = 'internal scratch']
  #allocation2 [shape = 'f32[8,8]{1,0:T(8,128)}', space=vmem, size = 0x1000, scoped, tag = 'scratch operand']
  #allocation3 [shape = 'f32[8,8]{1,0:T(8,128)}', space=vmem, size = 0x1000, scoped, tag = 'scratch operand']
  #allocation4 [shape = 'f32[1]{0:T(128)S(6)}', space=smem, size = 0x200, scoped, tag = 'scoped memory for tpu_custom_call.1']
  %s0 = inlined_call_operand.<no memory space> [shape: f32[1], index: 0, kind: input, shape index: {}]
  %s1 = inlined_call_operand.vmem [shape: s32[8,1], index: 1, kind: input, shape index: {}]
  %s2 = inlined_call_operand.vmem [shape: s32[1,8], index: 2, kind: input, shape index: {}]
  %s3 = inlined_call_operand.vmem [shape: f32[8,1], index: 3, kind: input, shape index: {}]
  %s4 = inlined_call_operand.vmem [shape: f32[1,8], index: 4, kind: input, shape index: {}]
  %s5 = inlined_call_operand.vmem [shape: f32[8,128], index: 5, kind: input, shape index: {}]
  %s6 = inlined_call_operand.vmem [shape: f32[8,128], index: 6, kind: input, shape index: {}]
  %s7 = inlined_call_operand.vmem [shape: f32[8,1], index: 7, kind: output, shape index: {}]
  %s8 = sld [smem:[#allocation0]]
  $region46: #{tpu_custom_call.1} parent=0
    _
  %s10 = ssub.s32 1, %s8
  %s11 = scalar_select 0, %s10, %s8
  %12 = sst [smem:[#allocation4]] %s0
  // Predicated region
  $region2: #{tpu_custom_call.1} parent=0 // pred_check
    _
  $region3: #{tpu_custom_call.1} parent=0 // pred_check_branch
    %14 = sbr.rel (0) target = $region5
  $region4: #{tpu_custom_call.1} parent=0 // pred_region
    _
  $region5: #{tpu_custom_call.1} parent=0 // pred_fallthru
    _
  // Predicated region
  $region6: #{tpu_custom_call.1} parent=0 // pred_check
    _
  $region7: #{tpu_custom_call.1} parent=0 // pred_check_branch
    %16 = sbr.rel (0) target = $region9
  $region8: #{tpu_custom_call.1} parent=0 // pred_region
    _
  $region9: #{tpu_custom_call.1} parent=0 // pred_fallthru
    _
  // Predicated region
  $region10: #{tpu_custom_call.1} parent=0 // pred_check
    _
  $region11: #{tpu_custom_call.1} parent=0 // pred_check_branch
    %18 = sbr.rel (0) target = $region13
  $region12: #{tpu_custom_call.1} parent=0 // pred_region
    _
  $region13: #{tpu_custom_call.1} parent=0 // pred_fallthru
    _
  // Predicated region
  $region14: #{tpu_custom_call.1} parent=0 // pred_check
    _
  $region15: #{tpu_custom_call.1} parent=0 // pred_check_branch
    %20 = sbr.rel (0) target = $region17
  $region16: #{tpu_custom_call.1} parent=0 // pred_region
    _
  $region17: #{tpu_custom_call.1} parent=0 // pred_fallthru
    _
  // Predicated region
  $region18: #{tpu_custom_call.1} parent=0 // pred_check
    _
  $region19: #{tpu_custom_call.1} parent=0 // pred_check_branch
    %22 = sbr.rel (0) target = $region21
  $region20: #{tpu_custom_call.1} parent=0 // pred_region
    _
  $region21: #{tpu_custom_call.1} parent=0 // pred_fallthru
    _
  // Predicated region
  $region22: #{tpu_custom_call.1} parent=0 // pred_check
    _
  $region23: #{tpu_custom_call.1} parent=0 // pred_check_branch
    %24 = sbr.rel (0) target = $region25
  $region24: #{tpu_custom_call.1} parent=0 // pred_region
    _
  $region25: #{tpu_custom_call.1} parent=0 // pred_fallthru
    _
  // Predicated region
  $region26: #{tpu_custom_call.1} parent=0 // pred_check
    _
  $region27: #{tpu_custom_call.1} parent=0 // pred_check_branch
    %26 = sbr.rel (0) target = $region29
  $region28: #{tpu_custom_call.1} parent=0 // pred_region
    _
  $region29: #{tpu_custom_call.1} parent=0 // pred_fallthru
    _
  %p27 = scmp.eq.s32.totalorder 0, 0
  // Predicated region
  $region30: #{tpu_custom_call.1} parent=0 // pred_check
    %p28 = pneg %p27
  $region31: #{tpu_custom_call.1} parent=0 // pred_check_branch
    %30 = sbr.rel (%p28) target = $region33
  $region32: #{tpu_custom_call.1} parent=0 // pred_region
    %vm31 = vcmask 64512
    %32 = vst.msk [vmem:[#allocation2] sm:$0xff] %vm31, -1.0
    %33 = vst.msk [vmem:[#allocation3] sm:$0xff] %vm31, inf
  $region33: #{tpu_custom_call.1} parent=0 // pred_fallthru
    _
  %v34 = vld [vmem:[%s5] sm:$0xff]
  %v35 = vld [vmem:[%s6] sm:$0xff]
  %36 = vmatpush.xpose.msra.mxu0 0.0
  %37 = vmatpush.xpose.msra.mxu0 0.0
  %38 = vmatpush.xpose.msra.mxu0 0.0
  %39 = vmatpush.xpose.msra.mxu0 0.0
  %40 = vmatpush.xpose.msra.mxu0 0.0
  %41 = vmatpush.xpose.msra.mxu0 0.0
  %42 = vmatpush.xpose.msra.mxu0 0.0
  %43 = vmatpush.xpose.msra.mxu0 0.0
  %44 = vmatpush.xpose.msra.mxu0 0.0
  %45 = vmatpush.xpose.msra.mxu0 0.0
  %46 = vmatpush.xpose.msra.mxu0 0.0
  %47 = vmatpush.xpose.msra.mxu0 0.0
  %48 = vmatpush.xpose.msra.mxu0 0.0
  %49 = vmatpush.xpose.msra.mxu0 0.0
  %50 = vmatpush.xpose.msra.mxu0 0.0
  %51 = vmatpush.xpose.msra.mxu0 %v35
  %52 = vmatmul.f32.gmra.mxu0 %v34
  %v53 = vpop.f32.mrf.mxu0
  %v54 = vadd.f32 0.0, %v53
  %55 = vdwg.mxu0
  %v56 = vld [vmem:[%s3] sm:$0xff]
  %v57 = vld [vmem:[%s4] sm:$0x1]
  %59 = vset.pattern.permute.xlu0 0
  %60 = vperm.xlu0 %59, %v56
  %v61 = vpop.permute.xlu0 %60
  %v64 = vperm.slane %v57, 0
  %v66 = vadd.f32 %v61, %v64
  %v67 = vmul.f32 %v54, 2.0
  %v68 = vsub.f32 %v66, %v67
  %v69 = vmax.f32 %v68, 0.0
  %v70 = vld [vmem:[%s1] sm:$0xff]
  %v71 = vld [vmem:[%s2] sm:$0x1]
  %72 = vset.pattern.permute.xlu0 0
  %73 = vperm.xlu0 %72, %v70
  %v74 = vpop.permute.xlu0 %73
  %v75 = vperm.slane %v71, 0
  %vm76 = vcmp.eq.s32.totalorder %v74, %v75
  %v77 = vlaneseq
  %v78 = vshrl.u32 %v77, 7
  %v79 = vlaneseq
  %v80 = vand.u32 %v79, 127
  %vm81 = vcmp.eq.s32.totalorder %v78, %v80
  %p82 = scmp.eq.s32.totalorder 0, 0
  %s83 = scalar_select %p82, 1, 0
  %v84 = vstv %s83
  %vm85 = vcmp.eq.s32.totalorder %v84, 1
  %vm86 = vmand %vm81, %vm85
  %vm87 = vmxor %vm86, 1
  %vm88 = vmand %vm76, %vm87
  %v89 = vld [vmem:[#allocation2] sm:$0xff]
  %v90 = vsel %vm88, %v69, -1.0
  %v91 = vmax.f32 %v89, %v90
  %vm92 = vcmask 64512
  %93 = vst.msk [vmem:[#allocation2] sm:$0xff] %vm92, %v91
  %v94 = vld [vmem:[#allocation3] sm:$0xff]
  %v95 = vsel %vm76, inf, %v69
  %v96 = vmin.f32 %v94, %v95
  %97 = vst.msk [vmem:[#allocation3] sm:$0xff] %vm92, %v96
  // Predicated region
  $region34: #{tpu_custom_call.1} parent=0 // pred_check
    %p98 = pneg %p27
  $region35: #{tpu_custom_call.1} parent=0 // pred_check_branch
    %100 = sbr.rel (%p98) target = $region37
  $region36: #{tpu_custom_call.1} parent=0 // pred_region
    %v101 = vld [vmem:[#allocation2] sm:$0xff]
    %v102 = vsel %vm92, %v101, -inf
    %103 = vmax.xlane.f32.xlu0 %v102
    %v104 = vpop.xlane.xlu0 %103
    %v105 = vld [vmem:[#allocation3] sm:$0xff]
    %v106 = vsel %vm92, %v105, inf
    %107 = vmin.xlane.f32.xlu0 %v106
    %v108 = vpop.xlane.xlu0 %107
    %vm109 = vcmp.ge.f32.partialorder %v104, 0.0
    %v110 = vmax.f32 %v104, 0.0
    %v111 = vadd.f32 %v110, 1e-12
    %v112 = vrsqrt.pop %v111
    %v113 = vmul.f32 %v112, %v111
    %v114 = vmul.f32 %v113, %v112
    %v115 = vmul.f32 0.5, %v114
    %v116 = vsub.f32 1.5, %v115
    %v117 = vmul.f32 %v112, %v116
    %v118 = vmul.f32 %v111, %v117
    %vm119 = vcmp.eq.f32.partialorder %v111, inf
    %v120 = vsel %vm119, %v111, %v118
    %vm121 = vcmp.eq.f32.partialorder %v111, 0.0
    %v122 = vand.u32 %v111, 2147483648
    %v123 = vsel %vm121, %v122, %v120
    %v124 = vsel %vm109, %v123, 0.0
    %v125 = vadd.f32 %v108, 1e-12
    %v126 = vrsqrt.pop %v125
    %v127 = vmul.f32 %v126, %v125
    %v128 = vmul.f32 %v127, %v126
    %v129 = vmul.f32 0.5, %v128
    %v130 = vsub.f32 1.5, %v129
    %v131 = vmul.f32 %v126, %v130
    %v132 = vmul.f32 %v125, %v131
    %vm133 = vcmp.eq.f32.partialorder %v125, inf
    %v134 = vsel %vm133, %v125, %v132
    %vm135 = vcmp.eq.f32.partialorder %v125, 0.0
    %v136 = vand.u32 %v125, 2147483648
    %v137 = vsel %vm135, %v136, %v134
    %s138 = sld [smem:[#allocation4]]
    %v139 = vsub.f32 %v124, %v137
    %v140 = vstv %s138
    %v141 = vadd.f32 %v139, %v140
    %v142 = vmax.f32 %v141, 0.0
    %vm143 = vcmask 7168
    %144 = vst.msk [vmem:[%s7] sm:$0xff] %vm143, %v142
  $region37: #{tpu_custom_call.1} parent=0 // pred_fallthru
    _
  // Predicated region
  $region38: #{tpu_custom_call.1} parent=0 // pred_check
    _
  $region39: #{tpu_custom_call.1} parent=0 // pred_check_branch
    %146 = sbr.rel (0) target = $region41
  $region40: #{tpu_custom_call.1} parent=0 // pred_region
    _
  $region41: #{tpu_custom_call.1} parent=0 // pred_fallthru
    _
  // Predicated region
  $region42: #{tpu_custom_call.1} parent=0 // pred_check
    _
  $region43: #{tpu_custom_call.1} parent=0 // pred_check_branch
    %148 = sbr.rel (0) target = $region45
  $region44: #{tpu_custom_call.1} parent=0 // pred_region
    _
  $region45: #{tpu_custom_call.1} parent=0 // pred_fallthru
    _

</llo_original>
